<compile_context>
chip_gen: v6e
topology: v6e:2x2x1
jax: 0.10.0
libtpu: 0.0.40
codegen_flags: <defaults>
</compile_context>

<pallas_src>
import functools
import math
from typing import NamedTuple

import jax
import jax.numpy as jnp
from jax.experimental import pallas as pl
from jax.experimental.pallas import tpu as pltpu


def _round_up(a, b):
    return ((a + b - 1) // b) * b


# ----------------------------------------------------------------------------
# Kernel
# ----------------------------------------------------------------------------
def _mlp_kernel(x_ref, w_ref, b_ref, o_ref, *, num_layers, dp, din_p, dout_p):
    """One row-tile of the fused MLP.

    x_ref : (TR, DIN_P)      bf16  activations tile (lane-dense, zero padded)
    w_ref : (L,  DP, DP)     bf16  stacked, padded weights (in, out), resident
    b_ref : (L,  1,  DP)     f32   stacked, padded biases, resident
    o_ref : (TR, DOUT_P)     f32   output tile
    """
    h = x_ref[...]                                        # (TR, DIN_P) bf16
    for l in range(num_layers):                           # static unroll (L small)
        in_w = din_p if l == 0 else dp
        out_w = dout_p if l == num_layers - 1 else dp
        w = w_ref[l, :in_w, :out_w]                       # 128-aligned static slice
        b = b_ref[l, :, :out_w]                           # (1, out_w) f32
        y = jnp.dot(h, w, preferred_element_type=jnp.float32) + b   # MXU bf16 -> f32 acc
        if l < num_layers - 1:
            h = jnp.maximum(y, 0.0).astype(jnp.bfloat16)  # f32 ReLU, bf16 for next MXU
        else:
            h = y                                         # no activation on last layer
    o_ref[...] = h


# ----------------------------------------------------------------------------
# One-time parameter packing (prepare/init step — not paid per forward call)
# ----------------------------------------------------------------------------
class PackedMLP(NamedTuple):
    w_stack: jax.Array   # (L, DP, DP) bf16
    b_stack: jax.Array   # (L, 1, DP)  f32
    din: int
    dout: int
    dp: int
    din_p: int
    dout_p: int


def pack_mlp_params(ws, bs):
    """ws[l]: (in_l, out_l) f32 (pre-transposed vs. PyTorch); bs[l]: (out_l,) f32."""
    din = ws[0].shape[0]
    dout = ws[-1].shape[1]
    dims = [din] + [w.shape[1] for w in ws]
    dp = _round_up(max(dims), 128)        # common lane-dense width
    din_p = _round_up(din, 128)
    dout_p = _round_up(dout, 128)

    w_stack = jnp.stack([
        jnp.pad(w.astype(jnp.float32),
                ((0, dp - w.shape[0]), (0, dp - w.shape[1])))
        for w in ws
    ]).astype(jnp.bfloat16)                                # (L, DP, DP)
    b_stack = jnp.stack([
        jnp.pad(b.astype(jnp.float32), (0, dp - b.shape[0]))[None, :]
        for b in bs
    ])                                                     # (L, 1, DP)
    return PackedMLP(w_stack, b_stack, din, dout, dp, din_p, dout_p)


# ----------------------------------------------------------------------------
# Forward wrapper
# ----------------------------------------------------------------------------
_VMEM_BUDGET_BYTES = 30 << 20   # fits the 32 MiB default scoped limit on all gens (incl. v7x)


def mlp_forward(params: PackedMLP, x, *, block_rows=1024):
    """x: (..., input_dim) f32  ->  (..., output_dim) f32."""
    num_layers = params.w_stack.shape[0]
    dp, din_p, dout_p = params.dp, params.din_p, params.dout_p
    din, dout = params.din, params.dout

    lead_shape = x.shape[:-1]
    R = math.prod(lead_shape) if lead_shape else 1

    # Row tile: as large as possible (amortise per-grid-step overhead),
    # multiple of 16 (bf16 sublane packing), capped by the VMEM budget.
    tr = min(_round_up(block_rows, 16), _round_up(R, 16))

    def vmem_bytes(t):
        return (2 * t * din_p * 2              # x tile, bf16, double-buffered
                + 2 * t * dout_p * 4           # out tile, f32, double-buffered
                + num_layers * dp * dp * 2     # weight stack, bf16, single buffer
                + num_layers * dp * 4          # bias stack, f32
                + 3 * t * dp * 4)              # f32 / bf16 hidden intermediates

    while tr > 16 and vmem_bytes(tr) > _VMEM_BUDGET_BYTES:
        tr = _round_up(tr // 2, 16)

    # v7x megacore: with enough rows, force >= 2 grid steps so the
    # ("parallel",) axis can spread tiles across both TensorCores.
    if R >= 512 and math.ceil(R / tr) < 2:
        tr = _round_up((R + 1) // 2, 16)

    R_pad = _round_up(R, tr)

    # Pad + cast the activations: lane-dense DIN_P width, bf16 for the DMA/MXU.
    x_flat = x.reshape(R, din).astype(jnp.float32)
    x_pad = jnp.pad(x_flat, ((0, R_pad - R), (0, din_p - din))).astype(jnp.bfloat16)

    out_pad = pl.pallas_call(
        functools.partial(_mlp_kernel, num_layers=num_layers, dp=dp,
                          din_p=din_p, dout_p=dout_p),
        out_shape=jax.ShapeDtypeStruct((R_pad, dout_p), jnp.float32),
        grid_spec=pltpu.PrefetchScalarGridSpec(
            num_scalar_prefetch=0,
            grid=(R_pad // tr,),
            in_specs=[
                pl.BlockSpec((tr, din_p), lambda i: (i, 0)),            # x tile
                pl.BlockSpec((num_layers, dp, dp), lambda i: (0, 0, 0),  # weights (resident)
                             pipeline_mode=pl.Buffered(1)),
                pl.BlockSpec((num_layers, 1, dp), lambda i: (0, 0, 0),   # biases (resident)
                             pipeline_mode=pl.Buffered(1)),
            ],
            out_specs=pl.BlockSpec((tr, dout_p), lambda i: (i, 0)),
        ),
        compiler_params=pltpu.CompilerParams(dimension_semantics=("parallel",)),
    )(x_pad, params.w_stack, params.b_stack)

    return out_pad[:R, :dout].reshape(lead_shape + (dout,))


# ----------------------------------------------------------------------------
# Pure-JAX reference (same math as the PyTorch module)
# ----------------------------------------------------------------------------
def reference_mlp(ws, bs, x):
    h = x
    n = len(ws)
    for i, (w, b) in enumerate(zip(ws, bs)):
        h = h @ w + b
        if i < n - 1:
            h = jnp.maximum(h, 0.0)
    return h


def init_params(key, input_dim, hidden_dim, output_dim, num_layers):
    """nn.Linear-style init; weights stored as (in_features, out_features)."""
    hs = [hidden_dim] * (num_layers - 1)
    in_dims = [input_dim] + hs
    out_dims = hs + [output_dim]
    ws, bs = [], []
    keys = jax.random.split(key, 2 * num_layers)
    for l, (di, do) in enumerate(zip(in_dims, out_dims)):
        k = 1.0 / math.sqrt(di)
        ws.append(jax.random.uniform(keys[2 * l], (di, do), jnp.float32, -k, k))
        bs.append(jax.random.uniform(keys[2 * l + 1], (do,), jnp.float32, -k, k))
    return ws, bs


if __name__ == "__main__":
    key = jax.random.PRNGKey(0)
    kp, kx = jax.random.split(key)

    # Small shapes consistent with the module: MLP(32, 64, 32, 3) applied to
    # (batch=2, seq=16, 32) features.
    input_dim, hidden_dim, output_dim, num_layers = 32, 64, 32, 3
    N, S = 2, 16

    ws, bs = init_params(kp, input_dim, hidden_dim, output_dim, num_layers)
    x = jax.random.normal(kx, (N, S, input_dim), jnp.float32)

    packed = pack_mlp_params(ws, bs)          # one-time prepare step
    out = mlp_forward(packed, x)
    out = jax.block_until_ready(out)

    ref = reference_mlp(ws, bs, x)

    assert out.shape == (N, S, output_dim), out.shape
    assert bool(jnp.all(jnp.isfinite(out)))
    # bf16 MXU operands -> small deviation vs the f32 reference (inference-grade).
    err = float(jnp.max(jnp.abs(out - ref)))
    assert err < 5e-2, f"mismatch vs reference: {err}"
    print("KERNEL_OK")
</pallas_src>

<mosaic_0001>
module attributes {stable_mosaic.version = 11 : i64} {
  func.func @_mlp_kernel(%arg0: i32, %arg1: memref<32x128xbf16, #tpu.memory_space<vmem>>, %arg2: memref<3x128x128xbf16, #tpu.memory_space<vmem>>, %arg3: memref<3x1x128xf32, #tpu.memory_space<vmem>>, %arg4: memref<32x128xf32, #tpu.memory_space<vmem>>) attributes {dimension_semantics = [#tpu.dimension_semantics<parallel>], iteration_bounds = array<i64: 1>, scalar_prefetch = 0 : i64, scratch_operands = 0 : i64, tpu.core_type = #tpu.core_type<tc>, window_params = [{transform_indices = @transform_0, window_bounds = array<i64: 32, 128>}, {pipeline_mode = #tpu.pipeline_mode<synchronous>, transform_indices = @transform_1, window_bounds = array<i64: 3, 128, 128>}, {pipeline_mode = #tpu.pipeline_mode<synchronous>, transform_indices = @transform_2, window_bounds = array<i64: 3, 1, 128>}, {transform_indices = @transform_3, window_bounds = array<i64: 32, 128>}]} {
    %c0 = arith.constant 0 : index
    %c0_0 = arith.constant 0 : index
    %0 = vector.load %arg1[%c0, %c0_0] : memref<32x128xbf16, #tpu.memory_space<vmem>>, vector<32x128xbf16>
    %c0_1 = arith.constant 0 : index
    %c0_2 = arith.constant 0 : index
    %c0_3 = arith.constant 0 : index
    %1 = vector.load %arg2[%c0_1, %c0_2, %c0_3] : memref<3x128x128xbf16, #tpu.memory_space<vmem>>, vector<1x128x128xbf16>
    %2 = vector.shape_cast %1 : vector<1x128x128xbf16> to vector<128x128xbf16>
    %c0_4 = arith.constant 0 : index
    %c0_5 = arith.constant 0 : index
    %c0_6 = arith.constant 0 : index
    %3 = vector.load %arg3[%c0_4, %c0_5, %c0_6] : memref<3x1x128xf32, #tpu.memory_space<vmem>>, vector<1x1x128xf32>
    %4 = vector.shape_cast %3 : vector<1x1x128xf32> to vector<1x128xf32>
    %cst = arith.constant dense<0.000000e+00> : vector<32x128xf32>
    %5 = tpu.matmul %0, %2, %cst {dimension_numbers = #tpu.dot_dimension_numbers<[1], [0], [0], [1], [0, 0, 1, 1], [], []>} : vector<32x128xbf16>, vector<128x128xbf16>, vector<32x128xf32> -> vector<32x128xf32>
    %6 = vector.broadcast %4 : vector<1x128xf32> to vector<32x128xf32>
    %7 = arith.addf %5, %6 : vector<32x128xf32>
    %cst_7 = arith.constant 0.000000e+00 : f32
    %8 = vector.broadcast %cst_7 : f32 to vector<32x128xf32>
    %9 = arith.maximumf %7, %8 : vector<32x128xf32>
    %10 = arith.truncf %9 : vector<32x128xf32> to vector<32x128xbf16>
    %c1 = arith.constant 1 : index
    %c0_8 = arith.constant 0 : index
    %c0_9 = arith.constant 0 : index
    %11 = vector.load %arg2[%c1, %c0_8, %c0_9] : memref<3x128x128xbf16, #tpu.memory_space<vmem>>, vector<1x128x128xbf16>
    %12 = vector.shape_cast %11 : vector<1x128x128xbf16> to vector<128x128xbf16>
    %c1_10 = arith.constant 1 : index
    %c0_11 = arith.constant 0 : index
    %c0_12 = arith.constant 0 : index
    %13 = vector.load %arg3[%c1_10, %c0_11, %c0_12] : memref<3x1x128xf32, #tpu.memory_space<vmem>>, vector<1x1x128xf32>
    %14 = vector.shape_cast %13 : vector<1x1x128xf32> to vector<1x128xf32>
    %cst_13 = arith.constant dense<0.000000e+00> : vector<32x128xf32>
    %15 = tpu.matmul %10, %12, %cst_13 {dimension_numbers = #tpu.dot_dimension_numbers<[1], [0], [0], [1], [0, 0, 1, 1], [], []>} : vector<32x128xbf16>, vector<128x128xbf16>, vector<32x128xf32> -> vector<32x128xf32>
    %16 = vector.broadcast %14 : vector<1x128xf32> to vector<32x128xf32>
    %17 = arith.addf %15, %16 : vector<32x128xf32>
    %cst_14 = arith.constant 0.000000e+00 : f32
    %18 = vector.broadcast %cst_14 : f32 to vector<32x128xf32>
    %19 = arith.maximumf %17, %18 : vector<32x128xf32>
    %20 = arith.truncf %19 : vector<32x128xf32> to vector<32x128xbf16>
    %c2 = arith.constant 2 : index
    %c0_15 = arith.constant 0 : index
    %c0_16 = arith.constant 0 : index
    %21 = vector.load %arg2[%c2, %c0_15, %c0_16] : memref<3x128x128xbf16, #tpu.memory_space<vmem>>, vector<1x128x128xbf16>
    %22 = vector.shape_cast %21 : vector<1x128x128xbf16> to vector<128x128xbf16>
    %c2_17 = arith.constant 2 : index
    %c0_18 = arith.constant 0 : index
    %c0_19 = arith.constant 0 : index
    %23 = vector.load %arg3[%c2_17, %c0_18, %c0_19] : memref<3x1x128xf32, #tpu.memory_space<vmem>>, vector<1x1x128xf32>
    %24 = vector.shape_cast %23 : vector<1x1x128xf32> to vector<1x128xf32>
    %cst_20 = arith.constant dense<0.000000e+00> : vector<32x128xf32>
    %25 = tpu.matmul %20, %22, %cst_20 {dimension_numbers = #tpu.dot_dimension_numbers<[1], [0], [0], [1], [0, 0, 1, 1], [], []>} : vector<32x128xbf16>, vector<128x128xbf16>, vector<32x128xf32> -> vector<32x128xf32>
    %26 = vector.broadcast %24 : vector<1x128xf32> to vector<32x128xf32>
    %27 = arith.addf %25, %26 : vector<32x128xf32>
    %c0_21 = arith.constant 0 : index
    %c0_22 = arith.constant 0 : index
    %28 = vector.load %arg4[%c0_21, %c0_22] : memref<32x128xf32, #tpu.memory_space<vmem>>, vector<32x128xf32>
    tpu.vector_store %arg4[%c0_21, %c0_22], %27 {strides = array<i32>} : memref<32x128xf32, #tpu.memory_space<vmem>>, vector<32x128xf32>,
    return
  }
  func.func @transform_0(%arg0: i32) -> (i32, i32) {
    %c0_i32 = arith.constant 0 : i32
    %c0_i32_0 = arith.constant 0 : i32
    return %arg0, %c0_i32 : i32, i32
  }
  func.func @transform_1(%arg0: i32) -> (i32, i32, i32) {
    %c0_i32 = arith.constant 0 : i32
    %c0_i32_0 = arith.constant 0 : i32
    %c0_i32_1 = arith.constant 0 : i32
    %c0_i32_2 = arith.constant 0 : i32
    return %c0_i32, %c0_i32_0, %c0_i32_1 : i32, i32, i32
  }
  func.func @transform_2(%arg0: i32) -> (i32, i32, i32) {
    %c0_i32 = arith.constant 0 : i32
    %c0_i32_0 = arith.constant 0 : i32
    %c0_i32_1 = arith.constant 0 : i32
    %c0_i32_2 = arith.constant 0 : i32
    return %c0_i32, %c0_i32_0, %c0_i32_1 : i32, i32, i32
  }
  func.func @transform_3(%arg0: i32) -> (i32, i32) {
    %c0_i32 = arith.constant 0 : i32
    %c0_i32_0 = arith.constant 0 : i32
    return %arg0, %c0_i32 : i32, i32
  }
}

</mosaic_0001>

<llo_original>
// kernel: tpu_custom_call.1
$region0: #{tpu_custom_call.1}
  #allocation0 [shape = 'u32[]', space=smem, size = 0x4, offset = 0x4, fixed_abs, tag = 'smem constant byte address 0x4 - core index']
  #allocation1 [shape = 'u32[144,128]{1,0:T(1,128)}', space=vmem, size = 0x12000, scoped, tag = 'internal scratch']
  %s0 = inlined_call_operand.hbm [shape: bf16[32,128], index: 0, kind: input, shape index: {}]
  %s1 = inlined_call_operand.hbm [shape: bf16[3,128,128], index: 1, kind: input, shape index: {}]
  %s2 = inlined_call_operand.vmem [shape: f32[3,1,128], index: 2, kind: input, shape index: {}]
  %s3 = inlined_call_operand.hbm [shape: f32[32,128], index: 3, kind: output, shape index: {}]
  %s4 = sld [smem:[#allocation0]]
  $region30: #{tpu_custom_call.1} parent=0
    _
  %s6 = ssub.s32 1, %s4
  %s7 = scalar_select 0, %s6, %s4
  $region1: #{tpu_custom_call.1} parent=0
    #allocation2 [shape = 'u8[8192]{0}', space=vmem, size = 0x2000, scoped, tag = 'input window, operand 0, single buffered']
    #allocation3 [shape = 's32[1]{0}', space=sflag, size = 0x4, scoped, tag = 'scoped memory for tpu_custom_call.1']
    #allocation4 [shape = 's32[1]{0}', space=sflag, size = 0x4, scoped, tag = 'scoped memory for tpu_custom_call.1']
    #allocation5 [shape = 'u8[98304]{0}', space=vmem, size = 0x18000, scoped, tag = 'input window, operand 1, single buffered']
    #allocation6 [shape = 's32[1]{0}', space=sflag, size = 0x4, scoped, tag = 'scoped memory for tpu_custom_call.1']
    #allocation7 [shape = 'u8[16384]{0}', space=vmem, size = 0x4000, scoped, tag = 'output window, operand 0, single buffered']
    %8 = vsyncpa [#allocation3], 0
    %9 = vsyncpa [#allocation6], 0
    %10 = vsyncpa [#allocation4], 0
    // Predicated region
    $region2: #{tpu_custom_call.1} parent=1 // pred_check
      _
    $region3: #{tpu_custom_call.1} parent=1 // pred_check_branch
      %12 = sbr.rel (0) target = $region5
    $region4: #{tpu_custom_call.1} parent=1 // pred_region
      %s14 = ssub.s32 256, 256
      %15 = vsyncadd [#allocation3], %s14
      %s16 = sshll.u32 [#allocation2], 4
      %s17 = int_to_ptr.vmem [resolvable:$true] %s16
      %22 = dma.hbm_to_vmem [thread:$0]  %s0, 256, %s17, [#allocation3], 64, 64, 4
    $region5: #{tpu_custom_call.1} parent=1 // pred_fallthru
      _
    // Predicated region
    $region6: #{tpu_custom_call.1} parent=1 // pred_check
      _
    $region7: #{tpu_custom_call.1} parent=1 // pred_check_branch
      %24 = sbr.rel (0) target = $region9
    $region8: #{tpu_custom_call.1} parent=1 // pred_region
      %s26 = ssub.s32 3072, 3072
      %27 = vsyncadd [#allocation6], %s26
      %s28 = sshll.u32 [#allocation5], 4
      %s29 = int_to_ptr.vmem [resolvable:$true] %s28
      %34 = dma.hbm_to_vmem [thread:$0]  %s1, 3072, %s29, [#allocation6], 64, 64, 4
    $region9: #{tpu_custom_call.1} parent=1 // pred_fallthru
      _
    // Predicated region
    $region10: #{tpu_custom_call.1} parent=1 // pred_check
      _
    $region11: #{tpu_custom_call.1} parent=1 // pred_check_branch
      %36 = sbr.rel (0) target = $region13
    $region12: #{tpu_custom_call.1} parent=1 // pred_region
      _
    $region13: #{tpu_custom_call.1} parent=1 // pred_fallthru
      _
    // Predicated region
    $region14: #{tpu_custom_call.1} parent=1 // pred_check
      _
    $region15: #{tpu_custom_call.1} parent=1 // pred_check_branch
      %38 = sbr.rel (0) target = $region17
    $region16: #{tpu_custom_call.1} parent=1 // pred_region
      %39 = dma.done [#allocation3], 256
    $region17: #{tpu_custom_call.1} parent=1 // pred_fallthru
      _
    // Predicated region
    $region18: #{tpu_custom_call.1} parent=1 // pred_check
      _
    $region19: #{tpu_custom_call.1} parent=1 // pred_check_branch
      %41 = sbr.rel (0) target = $region21
    $region20: #{tpu_custom_call.1} parent=1 // pred_region
      %42 = dma.done [#allocation6], 3072
    $region21: #{tpu_custom_call.1} parent=1 // pred_fallthru
      _
    %v44 = vld [vmem:[#allocation2] sm:$0xf]
    %v45 = vld [vmem:[#allocation2 + $0x4] sm:$0xf]
    %v46 = vld [vmem:[#allocation2 + $0x8] sm:$0xf]
    %v47 = vld [vmem:[#allocation2 + $0xc] sm:$0xf]
    %v48 = vld [vmem:[#allocation5] sm:$0xf]
    %v49 = vld [vmem:[#allocation5 + $0x4] sm:$0xf]
    %v50 = vld [vmem:[#allocation5 + $0x8] sm:$0xf]
    %v51 = vld [vmem:[#allocation5 + $0xc] sm:$0xf]
    %v52 = vld [vmem:[#allocation5 + $0x10] sm:$0xf]
    %v53 = vld [vmem:[#allocation5 + $0x14] sm:$0xf]
    %v54 = vld [vmem:[#allocation5 + $0x18] sm:$0xf]
    %v55 = vld [vmem:[#allocation5 + $0x1c] sm:$0xf]
    %v56 = vld [vmem:[#allocation5 + $0x20] sm:$0xf]
    %v57 = vld [vmem:[#allocation5 + $0x24] sm:$0xf]
    %v58 = vld [vmem:[#allocation5 + $0x28] sm:$0xf]
    %v59 = vld [vmem:[#allocation5 + $0x2c] sm:$0xf]
    %v60 = vld [vmem:[#allocation5 + $0x30] sm:$0xf]
    %v61 = vld [vmem:[#allocation5 + $0x34] sm:$0xf]
    %v62 = vld [vmem:[#allocation5 + $0x38] sm:$0xf]
    %v63 = vld [vmem:[#allocation5 + $0x3c] sm:$0xf]
    %v64 = vld [vmem:[%s2] sm:$0x1]
    %v66 = vlaneseq
    %v67 = vshrl.u32 %v66, 7
    %v68 = vsub.s32 0, %v67
    %v69 = vrot.slane %v64, %v68
    %v75 = vunpack.c.l.b16 %v44
    %v76 = vunpack.c.l.b16 %v45
    %v77 = vunpack.c.l.b16 %v46
    %v78 = vunpack.c.l.b16 %v47
    %v79 = vpack.c.b16 %v76, %v75
    %v80 = vpack.c.b16 %v78, %v77
    %v99 = vunpack.c.l.b16 %v48
    %v100 = vunpack.c.l.b16 %v49
    %v101 = vunpack.c.l.b16 %v50
    %v102 = vunpack.c.l.b16 %v51
    %v103 = vunpack.c.l.b16 %v52
    %v104 = vunpack.c.l.b16 %v53
    %v105 = vunpack.c.l.b16 %v54
    %v106 = vunpack.c.l.b16 %v55
    %v107 = vunpack.c.l.b16 %v56
    %v108 = vunpack.c.l.b16 %v57
    %v109 = vunpack.c.l.b16 %v58
    %v110 = vunpack.c.l.b16 %v59
    %v111 = vunpack.c.l.b16 %v60
    %v112 = vunpack.c.l.b16 %v61
    %v113 = vunpack.c.l.b16 %v62
    %v114 = vunpack.c.l.b16 %v63
    %v115 = vpack.c.b16 %v100, %v99
    %v116 = vpack.c.b16 %v102, %v101
    %v117 = vpack.c.b16 %v104, %v103
    %v118 = vpack.c.b16 %v106, %v105
    %v119 = vpack.c.b16 %v108, %v107
    %v120 = vpack.c.b16 %v110, %v109
    %v121 = vpack.c.b16 %v112, %v111
    %v122 = vpack.c.b16 %v114, %v113
    %131 = vmatprep.subr.bf16.mxu0 0
    %132 = vmatpush1.bf16.msra.mxu0 %v122
    %133 = vmatprep.subr.bf16.mxu0 0
    %134 = vmatpush1.bf16.msra.mxu0 %v121
    %135 = vmatprep.subr.bf16.mxu0 0
    %136 = vmatpush1.bf16.msra.mxu0 %v120
    %137 = vmatprep.subr.bf16.mxu0 0
    %138 = vmatpush1.bf16.msra.mxu0 %v119
    %139 = vmatprep.subr.bf16.mxu0 0
    %140 = vmatpush1.bf16.msra.mxu0 %v118
    %141 = vmatprep.subr.bf16.mxu0 0
    %142 = vmatpush1.bf16.msra.mxu0 %v117
    %143 = vmatprep.subr.bf16.mxu0 0
    %144 = vmatpush1.bf16.msra.mxu0 %v116
    %145 = vmatprep.subr.bf16.mxu0 0
    %146 = vmatpush1.bf16.msra.mxu0 %v115
    %147 = vmatprep.subr.bf16.mxu0 0
    %148 = vmatpush2.bf16.msra.mxu0 0
    %149 = vmatprep.subr.bf16.mxu0 0
    %150 = vmatpush2.bf16.msra.mxu0 0
    %151 = vmatprep.subr.bf16.mxu0 0
    %152 = vmatpush2.bf16.msra.mxu0 0
    %153 = vmatprep.subr.bf16.mxu0 0
    %154 = vmatpush2.bf16.msra.mxu0 0
    %155 = vmatprep.subr.bf16.mxu0 0
    %156 = vmatpush2.bf16.msra.mxu0 0
    %157 = vmatprep.subr.bf16.mxu0 0
    %158 = vmatpush2.bf16.msra.mxu0 0
    %159 = vmatprep.subr.bf16.mxu0 0
    %160 = vmatpush2.bf16.msra.mxu0 0
    %161 = vmatprep.subr.bf16.mxu0 0
    %162 = vmatpush2.bf16.msra.mxu0 0
    %163 = vmatprep.mubr.bf16.mxu0 0
    %164 = vmatmul.mubr.bf16.gmra.mxu0 %v79
    %v165 = vpop.f32.mrf.mxu0
    %v166 = vadd.f32 %v69, %v165
    %v167 = vpop.f32.mrf.mxu0
    %v168 = vpop.f32.mrf.mxu0
    %v169 = vadd.f32 %v69, %v168
    %v170 = vpop.f32.mrf.mxu0
    %171 = vmatprep.mubr.bf16.mxu0 0
    %172 = vmatmul.mubr.bf16.gmra.mxu0 %v80
    %v173 = vpop.f32.mrf.mxu0
    %v174 = vadd.f32 %v69, %v173
    %v175 = vpop.f32.mrf.mxu0
    %v176 = vpop.f32.mrf.mxu0
    %v177 = vadd.f32 %v69, %v176
    %v178 = vpop.f32.mrf.mxu0
    %179 = vdwg.mxu0
    %v180 = vmax.f32 %v166, 0.0
    %v181 = vmax.f32 %v169, 0.0
    %v182 = vmax.f32 %v174, 0.0
    %v183 = vmax.f32 %v177, 0.0
    %v184 = vpack.c.bf16 %v181, %v180
    %v185 = vpack.c.bf16 %v183, %v182
    %s186 = scalar_lea.vmem [#allocation5], 64
    %v187 = vld [vmem:[%s186] sm:$0xf]
    %v188 = vld [vmem:[%s186 + $0x4] sm:$0xf]
    %v189 = vld [vmem:[%s186 + $0x8] sm:$0xf]
    %v190 = vld [vmem:[%s186 + $0xc] sm:$0xf]
    %v191 = vld [vmem:[%s186 + $0x10] sm:$0xf]
    %v192 = vld [vmem:[%s186 + $0x14] sm:$0xf]
    %v193 = vld [vmem:[%s186 + $0x18] sm:$0xf]
    %v194 = vld [vmem:[%s186 + $0x1c] sm:$0xf]
    %v195 = vld [vmem:[%s186 + $0x20] sm:$0xf]
    %v196 = vld [vmem:[%s186 + $0x24] sm:$0xf]
    %v197 = vld [vmem:[%s186 + $0x28] sm:$0xf]
    %v198 = vld [vmem:[%s186 + $0x2c] sm:$0xf]
    %v199 = vld [vmem:[%s186 + $0x30] sm:$0xf]
    %v200 = vld [vmem:[%s186 + $0x34] sm:$0xf]
    %v201 = vld [vmem:[%s186 + $0x38] sm:$0xf]
    %v202 = vld [vmem:[%s186 + $0x3c] sm:$0xf]
    %s203 = scalar_lea.vmem %s2, 1
    %v204 = vld [vmem:[%s203] sm:$0x1]
    %v206 = vlaneseq
    %v207 = vshrl.u32 %v206, 7
    %v208 = vsub.s32 0, %v207
    %v209 = vrot.slane %v204, %v208
    %v227 = vunpack.c.l.b16 %v187
    %v228 = vunpack.c.l.b16 %v188
    %v229 = vunpack.c.l.b16 %v189
    %v230 = vunpack.c.l.b16 %v190
    %v231 = vunpack.c.l.b16 %v191
    %v232 = vunpack.c.l.b16 %v192
    %v233 = vunpack.c.l.b16 %v193
    %v234 = vunpack.c.l.b16 %v194
    %v235 = vunpack.c.l.b16 %v195
    %v236 = vunpack.c.l.b16 %v196
    %v237 = vunpack.c.l.b16 %v197
    %v238 = vunpack.c.l.b16 %v198
    %v239 = vunpack.c.l.b16 %v199
    %v240 = vunpack.c.l.b16 %v200
    %v241 = vunpack.c.l.b16 %v201
    %v242 = vunpack.c.l.b16 %v202
    %v243 = vpack.c.b16 %v228, %v227
    %v244 = vpack.c.b16 %v230, %v229
    %v245 = vpack.c.b16 %v232, %v231
    %v246 = vpack.c.b16 %v234, %v233
    %v247 = vpack.c.b16 %v236, %v235
    %v248 = vpack.c.b16 %v238, %v237
    %v249 = vpack.c.b16 %v240, %v239
    %v250 = vpack.c.b16 %v242, %v241
    %259 = vmatprep.subr.bf16.mxu0 0
    %260 = vmatpush1.bf16.msra.mxu0 %v250
    %261 = vmatprep.subr.bf16.mxu0 0
    %262 = vmatpush1.bf16.msra.mxu0 %v249
    %263 = vmatprep.subr.bf16.mxu0 0
    %264 = vmatpush1.bf16.msra.mxu0 %v248
    %265 = vmatprep.subr.bf16.mxu0 0
    %266 = vmatpush1.bf16.msra.mxu0 %v247
    %267 = vmatprep.subr.bf16.mxu0 0
    %268 = vmatpush1.bf16.msra.mxu0 %v246
    %269 = vmatprep.subr.bf16.mxu0 0
    %270 = vmatpush1.bf16.msra.mxu0 %v245
    %271 = vmatprep.subr.bf16.mxu0 0
    %272 = vmatpush1.bf16.msra.mxu0 %v244
    %273 = vmatprep.subr.bf16.mxu0 0
    %274 = vmatpush1.bf16.msra.mxu0 %v243
    %275 = vmatprep.subr.bf16.mxu0 0
    %276 = vmatpush2.bf16.msra.mxu0 0
    %277 = vmatprep.subr.bf16.mxu0 0
    %278 = vmatpush2.bf16.msra.mxu0 0
    %279 = vmatprep.subr.bf16.mxu0 0
    %280 = vmatpush2.bf16.msra.mxu0 0
    %281 = vmatprep.subr.bf16.mxu0 0
    %282 = vmatpush2.bf16.msra.mxu0 0
    %283 = vmatprep.subr.bf16.mxu0 0
    %284 = vmatpush2.bf16.msra.mxu0 0
    %285 = vmatprep.subr.bf16.mxu0 0
    %286 = vmatpush2.bf16.msra.mxu0 0
    %287 = vmatprep.subr.bf16.mxu0 0
    %288 = vmatpush2.bf16.msra.mxu0 0
    %289 = vmatprep.subr.bf16.mxu0 0
    %290 = vmatpush2.bf16.msra.mxu0 0
    %291 = vmatprep.mubr.bf16.mxu0 0
    %292 = vmatmul.mubr.bf16.gmra.mxu0 %v184
    %v293 = vpop.f32.mrf.mxu0
    %v294 = vadd.f32 %v209, %v293
    %v295 = vpop.f32.mrf.mxu0
    %v296 = vpop.f32.mrf.mxu0
    %v297 = vadd.f32 %v209, %v296
    %v298 = vpop.f32.mrf.mxu0
    %299 = vmatprep.mubr.bf16.mxu0 0
    %300 = vmatmul.mubr.bf16.gmra.mxu0 %v185
    %v301 = vpop.f32.mrf.mxu0
    %v302 = vadd.f32 %v209, %v301
    %v303 = vpop.f32.mrf.mxu0
    %v304 = vpop.f32.mrf.mxu0
    %v305 = vadd.f32 %v209, %v304
    %v306 = vpop.f32.mrf.mxu0
    %307 = vdwg.mxu0
    %v308 = vmax.f32 %v294, 0.0
    %v309 = vmax.f32 %v297, 0.0
    %v310 = vmax.f32 %v302, 0.0
    %v311 = vmax.f32 %v305, 0.0
    %v312 = vpack.c.bf16 %v309, %v308
    %v313 = vpack.c.bf16 %v311, %v310
    %s314 = scalar_lea.vmem [#allocation5], 128
    %v315 = vld [vmem:[%s314] sm:$0xf]
    %v316 = vld [vmem:[%s314 + $0x4] sm:$0xf]
    %v317 = vld [vmem:[%s314 + $0x8] sm:$0xf]
    %v318 = vld [vmem:[%s314 + $0xc] sm:$0xf]
    %v319 = vld [vmem:[%s314 + $0x10] sm:$0xf]
    %v320 = vld [vmem:[%s314 + $0x14] sm:$0xf]
    %v321 = vld [vmem:[%s314 + $0x18] sm:$0xf]
    %v322 = vld [vmem:[%s314 + $0x1c] sm:$0xf]
    %v323 = vld [vmem:[%s314 + $0x20] sm:$0xf]
    %v324 = vld [vmem:[%s314 + $0x24] sm:$0xf]
    %v325 = vld [vmem:[%s314 + $0x28] sm:$0xf]
    %v326 = vld [vmem:[%s314 + $0x2c] sm:$0xf]
    %v327 = vld [vmem:[%s314 + $0x30] sm:$0xf]
    %v328 = vld [vmem:[%s314 + $0x34] sm:$0xf]
    %v329 = vld [vmem:[%s314 + $0x38] sm:$0xf]
    %v330 = vld [vmem:[%s314 + $0x3c] sm:$0xf]
    %s331 = scalar_lea.vmem %s2, 2
    %v332 = vld [vmem:[%s331] sm:$0x1]
    %v334 = vlaneseq
    %v335 = vshrl.u32 %v334, 7
    %v336 = vsub.s32 0, %v335
    %v337 = vrot.slane %v332, %v336
    %v355 = vunpack.c.l.b16 %v315
    %v356 = vunpack.c.l.b16 %v316
    %v357 = vunpack.c.l.b16 %v317
    %v358 = vunpack.c.l.b16 %v318
    %v359 = vunpack.c.l.b16 %v319
    %v360 = vunpack.c.l.b16 %v320
    %v361 = vunpack.c.l.b16 %v321
    %v362 = vunpack.c.l.b16 %v322
    %v363 = vunpack.c.l.b16 %v323
    %v364 = vunpack.c.l.b16 %v324
    %v365 = vunpack.c.l.b16 %v325
    %v366 = vunpack.c.l.b16 %v326
    %v367 = vunpack.c.l.b16 %v327
    %v368 = vunpack.c.l.b16 %v328
    %v369 = vunpack.c.l.b16 %v329
    %v370 = vunpack.c.l.b16 %v330
    %v371 = vpack.c.b16 %v356, %v355
    %v372 = vpack.c.b16 %v358, %v357
    %v373 = vpack.c.b16 %v360, %v359
    %v374 = vpack.c.b16 %v362, %v361
    %v375 = vpack.c.b16 %v364, %v363
    %v376 = vpack.c.b16 %v366, %v365
    %v377 = vpack.c.b16 %v368, %v367
    %v378 = vpack.c.b16 %v370, %v369
    %387 = vmatprep.subr.bf16.mxu0 0
    %388 = vmatpush1.bf16.msra.mxu0 %v378
    %389 = vmatprep.subr.bf16.mxu0 0
    %390 = vmatpush1.bf16.msra.mxu0 %v377
    %391 = vmatprep.subr.bf16.mxu0 0
    %392 = vmatpush1.bf16.msra.mxu0 %v376
    %393 = vmatprep.subr.bf16.mxu0 0
    %394 = vmatpush1.bf16.msra.mxu0 %v375
    %395 = vmatprep.subr.bf16.mxu0 0
    %396 = vmatpush1.bf16.msra.mxu0 %v374
    %397 = vmatprep.subr.bf16.mxu0 0
    %398 = vmatpush1.bf16.msra.mxu0 %v373
    %399 = vmatprep.subr.bf16.mxu0 0
    %400 = vmatpush1.bf16.msra.mxu0 %v372
    %401 = vmatprep.subr.bf16.mxu0 0
    %402 = vmatpush1.bf16.msra.mxu0 %v371
    %403 = vmatprep.subr.bf16.mxu0 0
    %404 = vmatpush2.bf16.msra.mxu0 0
    %405 = vmatprep.subr.bf16.mxu0 0
    %406 = vmatpush2.bf16.msra.mxu0 0
    %407 = vmatprep.subr.bf16.mxu0 0
    %408 = vmatpush2.bf16.msra.mxu0 0
    %409 = vmatprep.subr.bf16.mxu0 0
    %410 = vmatpush2.bf16.msra.mxu0 0
    %411 = vmatprep.subr.bf16.mxu0 0
    %412 = vmatpush2.bf16.msra.mxu0 0
    %413 = vmatprep.subr.bf16.mxu0 0
    %414 = vmatpush2.bf16.msra.mxu0 0
    %415 = vmatprep.subr.bf16.mxu0 0
    %416 = vmatpush2.bf16.msra.mxu0 0
    %417 = vmatprep.subr.bf16.mxu0 0
    %418 = vmatpush2.bf16.msra.mxu0 0
    %419 = vmatprep.mubr.bf16.mxu0 0
    %420 = vmatmul.mubr.bf16.gmra.mxu0 %v312
    %v421 = vpop.f32.mrf.mxu0
    %v422 = vadd.f32 %v337, %v421
    %v423 = vpop.f32.mrf.mxu0
    %v424 = vpop.f32.mrf.mxu0
    %v425 = vadd.f32 %v337, %v424
    %v426 = vpop.f32.mrf.mxu0
    %427 = vmatprep.mubr.bf16.mxu0 0
    %428 = vmatmul.mubr.bf16.gmra.mxu0 %v313
    %v429 = vpop.f32.mrf.mxu0
    %v430 = vadd.f32 %v337, %v429
    %v431 = vpop.f32.mrf.mxu0
    %v432 = vpop.f32.mrf.mxu0
    %v433 = vadd.f32 %v337, %v432
    %v434 = vpop.f32.mrf.mxu0
    %435 = vdwg.mxu0
    %436 = vst [vmem:[#allocation7] sm:$0xff] %v422
    %437 = vst [vmem:[#allocation7 + $0x8] sm:$0xff] %v425
    %438 = vst [vmem:[#allocation7 + $0x10] sm:$0xff] %v430
    %439 = vst [vmem:[#allocation7 + $0x18] sm:$0xff] %v433
    // Predicated region
    $region22: #{tpu_custom_call.1} parent=1 // pred_check
      _
    $region23: #{tpu_custom_call.1} parent=1 // pred_check_branch
      %441 = sbr.rel (0) target = $region25
    $region24: #{tpu_custom_call.1} parent=1 // pred_region
      %s443 = ssub.s32 512, 512
      %444 = vsyncadd [#allocation4], %s443
      %s445 = sshll.u32 [#allocation7], 4
      %s446 = int_to_ptr.vmem [resolvable:$true] %s445
      %451 = dma.vmem_to_hbm [thread:$0]  %s446, 512, %s3, [#allocation4], 128, 128, 8
    $region25: #{tpu_custom_call.1} parent=1 // pred_fallthru
      _
    // Predicated region
    $region26: #{tpu_custom_call.1} parent=1 // pred_check
      _
    $region27: #{tpu_custom_call.1} parent=1 // pred_check_branch
      %453 = sbr.rel (0) target = $region29
    $region28: #{tpu_custom_call.1} parent=1 // pred_region
      %454 = dma.done [#allocation4], 512
    $region29: #{tpu_custom_call.1} parent=1 // pred_fallthru
      _
    %455 = vsyncpa [#allocation3], 1
    %456 = vsyncpa [#allocation6], 1
    %457 = vsyncpa [#allocation4], 1

</llo_original>
